<compile_context>
chip_gen: v6e
topology: v6e:2x2x1
jax: 0.10.0
libtpu: 0.0.40
codegen_flags: <defaults>
</compile_context>

<pallas_src>
import functools
import math

import jax
import jax.numpy as jnp
from jax import lax
from jax.experimental import pallas as pl
from jax.experimental.pallas import tpu as pltpu


def _round_up(x, m):
    return ((x + m - 1) // m) * m


# ----------------------------------------------------------------------------
# Tile selection / VMEM budgeting (all static, host-side)
# ----------------------------------------------------------------------------

_VMEM_BUDGET_BYTES = 28 << 20       # double-buffered per-step footprint target
_MAX_TM = 512
_MAX_TL = 512


def _label_tile(label_size):
    return min(_MAX_TL, _round_up(label_size, 128))


def _footprint_bytes(tm, tl, dp):
    feat = tm * dp * 2          # bf16
    w = tl * dp * 2             # bf16
    lab = tm * tl * 2           # bf16
    bias = _round_up(tl, 128) * 4
    logits = tm * tl * 4        # f32 out
    return 2 * (feat + w + lab + bias + logits)   # x2 for double buffering


def _batch_tile(batch, tl, dp):
    tm = min(_MAX_TM, _round_up(batch, 8))
    while tm > 8 and _footprint_bytes(tm, tl, dp) > _VMEM_BUDGET_BYTES:
        tm = max(8, _round_up(tm // 2, 8))
    return tm


# ----------------------------------------------------------------------------
# One-time (load-time) parameter preparation — hoisted out of the forward path
# ----------------------------------------------------------------------------

def prepare_mltc_head_params(weight, bias, *, param_dtype=jnp.bfloat16):
    """Cast + pad the classifier params to the kernel layout ONCE.

    weight: [label_size, D] (PyTorch nn.Linear layout), bias: [label_size].
    Returns (w_padded [Lp, Dp] param_dtype, b_padded [1, Lp] f32).
    """
    label_size, feat_dim = weight.shape
    tl = _label_tile(label_size)
    lp = _round_up(label_size, tl)
    dp = _round_up(feat_dim, 128)
    w_p = jnp.pad(weight.astype(param_dtype),
                  ((0, lp - label_size), (0, dp - feat_dim)))
    b_p = jnp.pad(bias.astype(jnp.float32), (0, lp - label_size)).reshape(1, lp)
    return w_p, b_p


# ----------------------------------------------------------------------------
# Kernel
# ----------------------------------------------------------------------------

def mltc_head_kernel(feat_ref, w_ref, b_ref, y_ref, logits_ref, lpart_ref, *,
                     batch, label_size, tm, tl, need_row_mask, need_col_mask):
    i = pl.program_id(0)            # batch-tile index
    j = pl.program_id(1)            # label-tile index

    # [tm, Dp] (bf16) x [tl, Dp] (bf16), contracting dim 1 of both operands
    # (weight kept in native [label, feature] layout — no transpose), single
    # full-K dot per tile, f32 accumulation on the MXU.
    z = lax.dot_general(
        feat_ref[...], w_ref[...],
        dimension_numbers=(((1,), (1,)), ((), ())),
        preferred_element_type=jnp.float32) + b_ref[...]        # [tm, tl] f32

    x = jax.nn.sigmoid(z)                                       # module: sigmoid(clf(.))
    logits_ref[...] = x.astype(logits_ref.dtype)

    # BCEWithLogitsLoss applied to the sigmoided logits, exactly as the
    # reference module does.  Since x = sigmoid(z) >= 0, max(x,0) == x and
    # |x| == x, so this equals the stable form max(x,0) - x*y + log1p(exp(-|x|)).
    y = y_ref[...].astype(jnp.float32)
    elem = x * (1.0 - y) + jnp.log1p(jnp.exp(-x))

    # Cheap edge masking: (tm,1) row mask AND (1,tl) col mask, built only when
    # padding actually exists (static at trace time).
    valid = None
    if need_row_mask:
        row_ok = (i * tm + lax.broadcasted_iota(jnp.int32, (tm, 1), 0)) < batch
        valid = row_ok
    if need_col_mask:
        col_ok = (j * tl + lax.broadcasted_iota(jnp.int32, (1, tl), 1)) < label_size
        valid = col_ok if valid is None else jnp.logical_and(valid, col_ok)
    if valid is not None:
        elem = jnp.where(valid, elem, 0.0)

    # Per-tile partial sum; reduced + normalized in the XLA wrapper.  No
    # cross-iteration state -> both grid axes can be "parallel".
    lpart_ref[0, 0] = jnp.sum(elem)


# ----------------------------------------------------------------------------
# Head wrapper
# ----------------------------------------------------------------------------

def mltc_head(features, w_padded, b_padded, labels, *, label_size):
    """logits = sigmoid(features @ W.T + b);  loss = BCEWithLogits(logits, labels).

    features: [B, D] f32, w_padded: [Lp, Dp] bf16 (pre-padded, native [L, D]
    layout), b_padded: [1, Lp] f32, labels: [B, label_size].
    Returns (logits [B, label_size] f32, loss scalar f32).
    """
    batch, feat_dim = features.shape
    lp, dp = w_padded.shape
    assert dp == _round_up(feat_dim, 128)

    tl = _label_tile(label_size)
    assert lp % tl == 0
    tm = _batch_tile(batch, tl, dp)
    bp = _round_up(batch, tm)

    # Per-call data prep (batch-sized only; the big [L, D] weight is pre-padded).
    feat_p = jnp.pad(features.astype(jnp.bfloat16),
                     ((0, bp - batch), (0, dp - feat_dim)))
    y_p = jnp.pad(labels.astype(jnp.bfloat16),
                  ((0, bp - batch), (0, lp - label_size)))

    n_b, n_l = bp // tm, lp // tl

    kernel = functools.partial(
        mltc_head_kernel,
        batch=batch, label_size=label_size, tm=tm, tl=tl,
        need_row_mask=(bp != batch), need_col_mask=(lp != label_size))

    cost = pl.CostEstimate(
        flops=2 * bp * dp * lp,
        transcendentals=3 * bp * lp,
        bytes_accessed=(bp * dp * 2 + n_b * lp * dp * 2 + lp * 4
                        + bp * lp * 2 + bp * lp * 4 + n_b * n_l * 4),
    )

    footprint = _footprint_bytes(tm, tl, dp)
    vmem_limit = max(min(footprint + (16 << 20), 64 << 20), 16 << 20)

    logits_p, lparts = pl.pallas_call(
        kernel,
        grid_spec=pltpu.PrefetchScalarGridSpec(
            num_scalar_prefetch=0,
            grid=(n_b, n_l),
            in_specs=[
                pl.BlockSpec((tm, dp), lambda i, j: (i, 0)),   # features (bf16)
                pl.BlockSpec((tl, dp), lambda i, j: (j, 0)),   # weight [L, D] (bf16)
                pl.BlockSpec((1, tl), lambda i, j: (0, j)),    # bias (f32)
                pl.BlockSpec((tm, tl), lambda i, j: (i, j)),   # labels (bf16)
            ],
            out_specs=(
                pl.BlockSpec((tm, tl), lambda i, j: (i, j)),   # logits (f32, lane-dense)
                pl.BlockSpec((1, 1), lambda i, j: (i, j),
                             memory_space=pltpu.MemorySpace.SMEM),  # per-tile loss sums
            ),
        ),
        out_shape=(
            jax.ShapeDtypeStruct((bp, lp), jnp.float32),
            jax.ShapeDtypeStruct((n_b, n_l), jnp.float32),
        ),
        compiler_params=pltpu.CompilerParams(
            # No cross-iteration state: both tile axes shard across TensorCores.
            dimension_semantics=("parallel", "parallel"),
            vmem_limit_bytes=vmem_limit),
        cost_estimate=cost,
    )(feat_p, w_padded, b_padded, y_p)

    loss = jnp.sum(lparts) * jnp.float32(1.0 / (batch * label_size))
    return logits_p[:batch, :label_size], loss


# ----------------------------------------------------------------------------
# Module forward (given the BERT hidden-state tuple)
# ----------------------------------------------------------------------------

@functools.partial(jax.jit, static_argnames=("feature_layers", "label_size"))
def mltc_net_forward(hidden_states, clf_weight_padded, clf_bias_padded, labels,
                     feature_layers, label_size):
    """Reproduces MltcNet.forward given the BERT hidden-state tuple.

    hidden_states: [num_layers+1, B, S, H]  (stands in for bert(...)[-1])
    Returns (features, logits, loss) like the PyTorch module.
    """
    # features = cat([outs[-i][:, 0] for i in 1..feature_layers], dim=-1).
    # `features` is a module output, so this [B, D] array must be materialized
    # in HBM regardless; fusing the gather into the kernel would save nothing.
    cls_chunks = [hidden_states[-i][:, 0, :] for i in range(1, feature_layers + 1)]
    features = jnp.concatenate(cls_chunks, axis=-1)            # [B, feature_layers*H]

    logits, loss = mltc_head(features, clf_weight_padded, clf_bias_padded,
                             labels, label_size=label_size)
    return features, logits, loss


if __name__ == "__main__":
    # Small synthetic shapes consistent with the module.
    B = 2                  # batch
    S = 8                  # sequence length
    H = 32                 # bert hidden size
    NUM_LAYERS = 4         # -> 5 hidden-state tensors (embeddings + 4 layers)
    FEATURE_LAYERS = 2
    LABEL_SIZE = 8
    D = FEATURE_LAYERS * H

    key = jax.random.PRNGKey(0)
    k_hs, k_w, k_b, k_lab = jax.random.split(key, 4)

    # Stand-in for bert(...)[-1]: tuple of hidden states, stacked.
    hidden_states = jax.random.normal(
        k_hs, (NUM_LAYERS + 1, B, S, H), dtype=jnp.float32)

    # clf = nn.Linear(feature_layers * hidden_size, label_size), xavier_uniform_ weight.
    xavier_bound = math.sqrt(6.0 / (D + LABEL_SIZE))
    clf_weight = jax.random.uniform(
        k_w, (LABEL_SIZE, D), minval=-xavier_bound, maxval=xavier_bound,
        dtype=jnp.float32)
    # nn.Linear default bias init: U(-1/sqrt(fan_in), 1/sqrt(fan_in)).
    bias_bound = 1.0 / math.sqrt(D)
    clf_bias = jax.random.uniform(
        k_b, (LABEL_SIZE,), minval=-bias_bound, maxval=bias_bound,
        dtype=jnp.float32)

    # Multi-label targets in {0, 1}.
    labels = jax.random.bernoulli(k_lab, p=0.5, shape=(B, LABEL_SIZE)).astype(
        jnp.float32)

    # One-time parameter prep (load-time, outside the jitted forward path).
    w_padded, b_padded = prepare_mltc_head_params(clf_weight, clf_bias)

    features, logits, loss = mltc_net_forward(
        hidden_states, w_padded, b_padded, labels, FEATURE_LAYERS, LABEL_SIZE)

    jax.block_until_ready((features, logits, loss))

    assert features.shape == (B, D)
    assert logits.shape == (B, LABEL_SIZE)
    assert loss.shape == ()
    assert bool(jnp.isfinite(loss))
    assert bool(jnp.all(jnp.isfinite(logits)))
    assert bool(jnp.all((logits >= 0.0) & (logits <= 1.0)))

    print("KERNEL_OK")
</pallas_src>

<mosaic_0001>
module attributes {stable_mosaic.version = 11 : i64} {
  func.func @mltc_head_kernel(%arg0: i32, %arg1: i32, %arg2: memref<8x128xbf16, #tpu.memory_space<vmem>>, %arg3: memref<128x128xbf16, #tpu.memory_space<vmem>>, %arg4: memref<1x128xf32, #tpu.memory_space<vmem>>, %arg5: memref<8x128xbf16, #tpu.memory_space<vmem>>, %arg6: memref<8x128xf32, #tpu.memory_space<vmem>>, %arg7: memref<1x1xf32, #tpu.memory_space<smem>>) attributes {dimension_semantics = [#tpu.dimension_semantics<parallel>, #tpu.dimension_semantics<parallel>], iteration_bounds = array<i64: 1, 1>, scalar_prefetch = 0 : i64, scratch_operands = 0 : i64, tpu.core_type = #tpu.core_type<tc>, window_params = [{transform_indices = @transform_0, window_bounds = array<i64: 8, 128>}, {transform_indices = @transform_1, window_bounds = array<i64: 128, 128>}, {transform_indices = @transform_2, window_bounds = array<i64: 1, 128>}, {transform_indices = @transform_3, window_bounds = array<i64: 8, 128>}, {transform_indices = @transform_4, window_bounds = array<i64: 8, 128>}, {transform_indices = @transform_5, window_bounds = array<i64: 1, 1>}]} {
    %c0 = arith.constant 0 : index
    %c0_0 = arith.constant 0 : index
    %0 = vector.load %arg2[%c0, %c0_0] : memref<8x128xbf16, #tpu.memory_space<vmem>>, vector<8x128xbf16>
    %c0_1 = arith.constant 0 : index
    %c0_2 = arith.constant 0 : index
    %1 = vector.load %arg3[%c0_1, %c0_2] : memref<128x128xbf16, #tpu.memory_space<vmem>>, vector<128x128xbf16>
    %cst = arith.constant dense<0.000000e+00> : vector<8x128xf32>
    %2 = tpu.matmul %0, %1, %cst {dimension_numbers = #tpu.dot_dimension_numbers<[1], [1], [0], [0], [0, 0, 1, 0], [], []>} : vector<8x128xbf16>, vector<128x128xbf16>, vector<8x128xf32> -> vector<8x128xf32>
    %c0_3 = arith.constant 0 : index
    %c0_4 = arith.constant 0 : index
    %3 = vector.load %arg4[%c0_3, %c0_4] : memref<1x128xf32, #tpu.memory_space<vmem>>, vector<1x128xf32>
    %4 = vector.broadcast %3 : vector<1x128xf32> to vector<8x128xf32>
    %5 = arith.addf %2, %4 : vector<8x128xf32>
    %6 = arith.negf %5 : vector<8x128xf32>
    %7 = math.exp %6 : vector<8x128xf32>
    %cst_5 = arith.constant 1.000000e+00 : f32
    %8 = vector.broadcast %cst_5 : f32 to vector<8x128xf32>
    %9 = arith.addf %8, %7 : vector<8x128xf32>
    %10 = arith.divf %8, %9 : vector<8x128xf32>
    %c0_6 = arith.constant 0 : index
    %c0_7 = arith.constant 0 : index
    %11 = vector.load %arg6[%c0_6, %c0_7] : memref<8x128xf32, #tpu.memory_space<vmem>>, vector<8x128xf32>
    tpu.vector_store %arg6[%c0_6, %c0_7], %10 {strides = array<i32>} : memref<8x128xf32, #tpu.memory_space<vmem>>, vector<8x128xf32>,
    %c0_8 = arith.constant 0 : index
    %c0_9 = arith.constant 0 : index
    %12 = vector.load %arg5[%c0_8, %c0_9] : memref<8x128xbf16, #tpu.memory_space<vmem>>, vector<8x128xbf16>
    %13 = arith.extf %12 : vector<8x128xbf16> to vector<8x128xf32>
    %cst_10 = arith.constant 1.000000e+00 : f32
    %14 = vector.broadcast %cst_10 : f32 to vector<8x128xf32>
    %15 = arith.subf %14, %13 : vector<8x128xf32>
    %16 = arith.mulf %10, %15 : vector<8x128xf32>
    %cst_11 = arith.constant 0.000000e+00 : f32
    %17 = vector.broadcast %cst_11 : f32 to vector<8x128xf32>
    %18 = arith.subf %17, %10 : vector<8x128xf32>
    %19 = math.exp %18 : vector<8x128xf32>
    %20 = math.log1p %19 : vector<8x128xf32>
    %21 = arith.addf %16, %20 : vector<8x128xf32>
    %c8_i32 = arith.constant 8 : i32
    %22 = arith.muli %arg0, %c8_i32 : i32
    %23 = tpu.iota {dimensions = array<i32: 0>} : vector<8x1xi32>
    %24 = vector.broadcast %22 : i32 to vector<8x1xi32>
    %25 = arith.addi %24, %23 : vector<8x1xi32>
    %c2_i32 = arith.constant 2 : i32
    %26 = vector.broadcast %c2_i32 : i32 to vector<8x1xi32>
    %27 = arith.cmpi slt, %25, %26 : vector<8x1xi32>
    %c128_i32 = arith.constant 128 : i32
    %28 = arith.muli %arg1, %c128_i32 : i32
    %29 = tpu.iota {dimensions = array<i32: 1>} : vector<1x128xi32>
    %30 = vector.broadcast %28 : i32 to vector<1x128xi32>
    %31 = arith.addi %30, %29 : vector<1x128xi32>
    %c8_i32_12 = arith.constant 8 : i32
    %32 = vector.broadcast %c8_i32_12 : i32 to vector<1x128xi32>
    %33 = arith.cmpi slt, %31, %32 : vector<1x128xi32>
    %34 = vector.broadcast %27 : vector<8x1xi1> to vector<8x128xi1>
    %35 = vector.broadcast %33 : vector<1x128xi1> to vector<8x128xi1>
    %36 = arith.andi %34, %35 : vector<8x128xi1>
    %cst_13 = arith.constant 0.000000e+00 : f32
    %37 = vector.broadcast %cst_13 : f32 to vector<8x128xf32>
    %38 = arith.select %36, %21, %37 : vector<8x128xi1>, vector<8x128xf32>
    %39 = vector.shape_cast %38 : vector<8x128xf32> to vector<1x8x128xf32>
    %cst_14 = arith.constant dense<0.000000e+00> : vector<1xf32>
    %40 = vector.multi_reduction <add>, %39, %cst_14 [1, 2] : vector<1x8x128xf32> to vector<1xf32>
    %41 = vector.shape_cast %40 : vector<1xf32> to vector<1x1x1xf32>
    %42 = vector.extract %41[0, 0, 0] : f32 from vector<1x1x1xf32>
    %c0_15 = arith.constant 0 : index
    %c0_16 = arith.constant 0 : index
    %43 = memref.load %arg7[%c0_15, %c0_16] : memref<1x1xf32, #tpu.memory_space<smem>>
    memref.store %42, %arg7[%c0_15, %c0_16] : memref<1x1xf32, #tpu.memory_space<smem>>
    return
  }
  func.func @transform_0(%arg0: i32, %arg1: i32) -> (i32, i32) {
    %c0_i32 = arith.constant 0 : i32
    %c0_i32_0 = arith.constant 0 : i32
    return %arg0, %c0_i32 : i32, i32
  }
  func.func @transform_1(%arg0: i32, %arg1: i32) -> (i32, i32) {
    %c0_i32 = arith.constant 0 : i32
    %c0_i32_0 = arith.constant 0 : i32
    return %arg1, %c0_i32 : i32, i32
  }
  func.func @transform_2(%arg0: i32, %arg1: i32) -> (i32, i32) {
    %c0_i32 = arith.constant 0 : i32
    %c0_i32_0 = arith.constant 0 : i32
    return %c0_i32, %arg1 : i32, i32
  }
  func.func @transform_3(%arg0: i32, %arg1: i32) -> (i32, i32) {
    %c0_i32 = arith.constant 0 : i32
    return %arg0, %arg1 : i32, i32
  }
  func.func @transform_4(%arg0: i32, %arg1: i32) -> (i32, i32) {
    %c0_i32 = arith.constant 0 : i32
    return %arg0, %arg1 : i32, i32
  }
  func.func @transform_5(%arg0: i32, %arg1: i32) -> (i32, i32) {
    %c0_i32 = arith.constant 0 : i32
    return %arg0, %arg1 : i32, i32
  }
}

</mosaic_0001>

<llo_original>
// kernel: mltc_net_forward.1
$region0: #{mltc_net_forward.1}
  #allocation0 [shape = 'u32[]', space=smem, size = 0x4, offset = 0x4, fixed_abs, tag = 'smem constant byte address 0x4 - core index']
  #allocation1 [shape = 'u32[144,128]{1,0:T(1,128)}', space=vmem, size = 0x12000, scoped, tag = 'internal scratch']
  %s0 = inlined_call_operand.vmem [shape: bf16[8,128], index: 0, kind: input, shape index: {}]
  %s1 = inlined_call_operand.vmem [shape: bf16[128,128], index: 1, kind: input, shape index: {}]
  %s2 = inlined_call_operand.vmem [shape: f32[1,128], index: 2, kind: input, shape index: {}]
  %s3 = inlined_call_operand.vmem [shape: bf16[8,128], index: 3, kind: input, shape index: {}]
  %s4 = inlined_call_operand.vmem [shape: f32[8,128], index: 4, kind: output, shape index: {0}]
  %s5 = inlined_call_operand.hbm [shape: f32[1,1], index: 5, kind: output, shape index: {1}]
  %6 = xla_tuple %s4, %s5
  %s7 = sld [smem:[#allocation0]]
  $region34: #{mltc_net_forward.1} parent=0
    _
  %s9 = ssub.s32 1, %s7
  %s10 = scalar_select 0, %s9, %s7
  $region1: #{mltc_net_forward.1} parent=0
    #allocation2 [shape = 'u8[512]{0}', space=smem, size = 0x200, scoped, tag = 'output window, operand 1, single buffered']
    #allocation3 [shape = 's32[1]{0}', space=sflag, size = 0x4, scoped, tag = 'scoped memory for mltc_net_forward.1']
    %11 = vsyncpa [#allocation3], 0
    // Predicated region
    $region2: #{mltc_net_forward.1} parent=1 // pred_check
      _
    $region3: #{mltc_net_forward.1} parent=1 // pred_check_branch
      %13 = sbr.rel (0) target = $region5
    $region4: #{mltc_net_forward.1} parent=1 // pred_region
      _
    $region5: #{mltc_net_forward.1} parent=1 // pred_fallthru
      _
    // Predicated region
    $region6: #{mltc_net_forward.1} parent=1 // pred_check
      _
    $region7: #{mltc_net_forward.1} parent=1 // pred_check_branch
      %15 = sbr.rel (0) target = $region9
    $region8: #{mltc_net_forward.1} parent=1 // pred_region
      _
    $region9: #{mltc_net_forward.1} parent=1 // pred_fallthru
      _
    // Predicated region
    $region10: #{mltc_net_forward.1} parent=1 // pred_check
      _
    $region11: #{mltc_net_forward.1} parent=1 // pred_check_branch
      %17 = sbr.rel (0) target = $region13
    $region12: #{mltc_net_forward.1} parent=1 // pred_region
      _
    $region13: #{mltc_net_forward.1} parent=1 // pred_fallthru
      _
    // Predicated region
    $region14: #{mltc_net_forward.1} parent=1 // pred_check
      _
    $region15: #{mltc_net_forward.1} parent=1 // pred_check_branch
      %19 = sbr.rel (0) target = $region17
    $region16: #{mltc_net_forward.1} parent=1 // pred_region
      _
    $region17: #{mltc_net_forward.1} parent=1 // pred_fallthru
      _
    %v21 = vld [vmem:[%s0] sm:$0xf]
    %v22 = vld [vmem:[%s1] sm:$0xf]
    %v23 = vld [vmem:[%s1 + $0x4] sm:$0xf]
    %v24 = vld [vmem:[%s1 + $0x8] sm:$0xf]
    %v25 = vld [vmem:[%s1 + $0xc] sm:$0xf]
    %v26 = vld [vmem:[%s1 + $0x10] sm:$0xf]
    %v27 = vld [vmem:[%s1 + $0x14] sm:$0xf]
    %v28 = vld [vmem:[%s1 + $0x18] sm:$0xf]
    %v29 = vld [vmem:[%s1 + $0x1c] sm:$0xf]
    %v30 = vld [vmem:[%s1 + $0x20] sm:$0xf]
    %v31 = vld [vmem:[%s1 + $0x24] sm:$0xf]
    %v32 = vld [vmem:[%s1 + $0x28] sm:$0xf]
    %v33 = vld [vmem:[%s1 + $0x2c] sm:$0xf]
    %v34 = vld [vmem:[%s1 + $0x30] sm:$0xf]
    %v35 = vld [vmem:[%s1 + $0x34] sm:$0xf]
    %v36 = vld [vmem:[%s1 + $0x38] sm:$0xf]
    %v37 = vld [vmem:[%s1 + $0x3c] sm:$0xf]
    %v38 = vld [vmem:[%s2] sm:$0x1]
    %v40 = vlaneseq
    %v41 = vshrl.u32 %v40, 7
    %v42 = vsub.s32 0, %v41
    %v43 = vrot.slane %v38, %v42
    %v61 = vunpack.c.l.b16 %v22
    %v62 = vunpack.c.l.b16 %v23
    %v63 = vunpack.c.l.b16 %v24
    %v64 = vunpack.c.l.b16 %v25
    %v65 = vunpack.c.l.b16 %v26
    %v66 = vunpack.c.l.b16 %v27
    %v67 = vunpack.c.l.b16 %v28
    %v68 = vunpack.c.l.b16 %v29
    %v69 = vunpack.c.l.b16 %v30
    %v70 = vunpack.c.l.b16 %v31
    %v71 = vunpack.c.l.b16 %v32
    %v72 = vunpack.c.l.b16 %v33
    %v73 = vunpack.c.l.b16 %v34
    %v74 = vunpack.c.l.b16 %v35
    %v75 = vunpack.c.l.b16 %v36
    %v76 = vunpack.c.l.b16 %v37
    %v77 = vpack.c.b16 %v62, %v61
    %v78 = vpack.c.b16 %v64, %v63
    %v79 = vpack.c.b16 %v66, %v65
    %v80 = vpack.c.b16 %v68, %v67
    %v81 = vpack.c.b16 %v70, %v69
    %v82 = vpack.c.b16 %v72, %v71
    %v83 = vpack.c.b16 %v74, %v73
    %v84 = vpack.c.b16 %v76, %v75
    %93 = vmatprep.subr.bf16.mxu0 0
    %94 = vmatpush1.bf16.xpose.msra.mxu0 %v84
    %95 = vmatprep.subr.bf16.mxu0 0
    %96 = vmatpush1.bf16.xpose.msra.mxu0 %v83
    %97 = vmatprep.subr.bf16.mxu0 0
    %98 = vmatpush1.bf16.xpose.msra.mxu0 %v82
    %99 = vmatprep.subr.bf16.mxu0 0
    %100 = vmatpush1.bf16.xpose.msra.mxu0 %v81
    %101 = vmatprep.subr.bf16.mxu0 0
    %102 = vmatpush1.bf16.xpose.msra.mxu0 %v80
    %103 = vmatprep.subr.bf16.mxu0 0
    %104 = vmatpush1.bf16.xpose.msra.mxu0 %v79
    %105 = vmatprep.subr.bf16.mxu0 0
    %106 = vmatpush1.bf16.xpose.msra.mxu0 %v78
    %107 = vmatprep.subr.bf16.mxu0 0
    %108 = vmatpush1.bf16.xpose.msra.mxu0 %v77
    %109 = vmatprep.subr.bf16.mxu0 0
    %110 = vmatpush2.bf16.xpose.msra.mxu0 0
    %111 = vmatprep.subr.bf16.mxu0 0
    %112 = vmatpush2.bf16.xpose.msra.mxu0 0
    %113 = vmatprep.subr.bf16.mxu0 0
    %114 = vmatpush2.bf16.xpose.msra.mxu0 0
    %115 = vmatprep.subr.bf16.mxu0 0
    %116 = vmatpush2.bf16.xpose.msra.mxu0 0
    %117 = vmatprep.subr.bf16.mxu0 0
    %118 = vmatpush2.bf16.xpose.msra.mxu0 0
    %119 = vmatprep.subr.bf16.mxu0 0
    %120 = vmatpush2.bf16.xpose.msra.mxu0 0
    %121 = vmatprep.subr.bf16.mxu0 0
    %122 = vmatpush2.bf16.xpose.msra.mxu0 0
    %123 = vmatprep.subr.bf16.mxu0 0
    %124 = vmatpush2.bf16.xpose.msra.mxu0 0
    %125 = vmatprep.mubr.bf16.mxu0 0
    %126 = vmatmul.mubr.bf16.gmra.mxu0 %v21
    %v127 = vpop.f32.mrf.mxu0
    %v128 = vadd.f32 %v43, %v127
    %v129 = vpop.f32.mrf.mxu0
    %v130 = vpop.f32.mrf.mxu0
    %v131 = vpop.f32.mrf.mxu0
    %132 = vdwg.mxu0
    %v133 = vxor.u32 %v128, 2147483648
    %v134 = vmul.f32 %v133, 1.442695
    %v135 = vpow.pop %v134
    %v136 = vadd.f32 %v135, 1.0
    %v137 = vrcp.pop %v136
    %v138 = vmul.f32 1.0, %v137
    %139 = vst [vmem:[%s4] sm:$0xff] %v138
    %v140 = vld [vmem:[%s3] sm:$0xf]
    %v141 = vunpack.c.l.bf16 %v140
    %v142 = vsub.f32 1.0, %v141
    %v143 = vmul.f32 %v138, %v142
    %v144 = vsub.f32 0.0, %v138
    %v145 = vmul.f32 %v144, 1.442695
    %v146 = vpow.pop %v145
    %v147 = vadd.f32 %v146, 1.0
    %v148 = vlog2.pop %v147
    %v149 = vmul.f32 %v148, 0.6931472
    %v150 = vmul.f32 -0.5, %v146
    %v151 = vadd.f32 %v150, 1.0
    %v152 = vmul.f32 %v151, %v146
    %v153 = vand.u32 2147483647, %v146
    %vm154 = vcmp.lt.f32.partialorder %v153, 0.0004427343
    %v155 = vsel %vm154, %v152, %v149
    %v156 = vadd.f32 %v143, %v155
    %s157 = smul.u32 0, 8
    %v158 = vlaneseq
    %v159 = vshrl.u32 %v158, 7
    %v160 = vstv %s157
    %v161 = vadd.s32 %v160, %v159
    %vm162 = vcmp.lt.s32.totalorder %v161, 2
    %s163 = smul.u32 0, 128
    %v164 = vlaneseq
    %v165 = vand.u32 %v164, 127
    %v166 = vstv %s163
    %v167 = vadd.s32 %v166, %v165
    %vm168 = vcmp.lt.s32.totalorder %v167, 8
    %v169 = vsel %vm162, 1, 0
    %vm170 = vcmp.eq.s32.totalorder %v169, 1
    %v171 = vsel %vm168, 1, 0
    %vm172 = vcmp.eq.s32.totalorder %v171, 1
    %vm173 = vmand %vm170, %vm172
    %v174 = vsel %vm173, %v156, 0.0
    %175 = vadd.xlane.f32.xlu0 %v174
    %v176 = vpop.xlane.xlu0 %175
    %v177 = vrot.slane %v176, 4
    %v178 = vadd.f32 %v176, %v177
    %v179 = vrot.slane %v178, 2
    %v180 = vadd.f32 %v178, %v179
    %v181 = vrot.slane %v180, 1
    %v182 = vadd.f32 %v180, %v181
    %s183 = vtos %v182
    %s184 = scalar_lea.smem [#allocation2], 0
    %185 = sst [smem:[%s184]] %s183
    // Predicated region
    $region18: #{mltc_net_forward.1} parent=1 // pred_check
      _
    $region19: #{mltc_net_forward.1} parent=1 // pred_check_branch
      %187 = sbr.rel (0) target = $region21
    $region20: #{mltc_net_forward.1} parent=1 // pred_region
      _
    $region21: #{mltc_net_forward.1} parent=1 // pred_fallthru
      _
    // Predicated region
    $region22: #{mltc_net_forward.1} parent=1 // pred_check
      _
    $region23: #{mltc_net_forward.1} parent=1 // pred_check_branch
      %189 = sbr.rel (0) target = $region25
    $region24: #{mltc_net_forward.1} parent=1 // pred_region
      %s191 = ssub.s32 16, 16
      %192 = vsyncadd [#allocation3], %s191
      %195 = dma.smem_to_hbm [#allocation2], 16, %s5, [#allocation3]
    $region25: #{mltc_net_forward.1} parent=1 // pred_fallthru
      _
    // Predicated region
    $region26: #{mltc_net_forward.1} parent=1 // pred_check
      _
    $region27: #{mltc_net_forward.1} parent=1 // pred_check_branch
      %197 = sbr.rel (0) target = $region29
    $region28: #{mltc_net_forward.1} parent=1 // pred_region
      _
    $region29: #{mltc_net_forward.1} parent=1 // pred_fallthru
      _
    // Predicated region
    $region30: #{mltc_net_forward.1} parent=1 // pred_check
      _
    $region31: #{mltc_net_forward.1} parent=1 // pred_check_branch
      %199 = sbr.rel (0) target = $region33
    $region32: #{mltc_net_forward.1} parent=1 // pred_region
      %200 = dma.done [#allocation3], 16
    $region33: #{mltc_net_forward.1} parent=1 // pred_fallthru
      _
    %201 = sfence
    %202 = vsyncpa [#allocation3], 1

</llo_original>
